<compile_context>
chip_gen: v6e
topology: v6e:2x2x1
jax: 0.10.0
libtpu: 0.0.40
codegen_flags: <defaults>
</compile_context>

<pallas_src>
import functools

import numpy as np
import jax
import jax.numpy as jnp
from jax.experimental import pallas as pl
from jax.experimental.pallas import tpu as pltpu


def _cbam_kernel(x_ref, wb_ref, km_ref, o_ref, *, reverse):
    f32 = jnp.float32
    x = x_ref[...].astype(f32)                          # (bn, C, HW)  lane = HW
    bn, C, HW = x.shape

    # ---------------- Channel attention (fused MLP affine) ----------------
    avg_p = jnp.mean(x, axis=2)                         # (bn, C)  lane reduction
    max_p = jnp.max(x, axis=2)                          # (bn, C)
    pooled = avg_p + max_p                              # (bn, C)
    wb = wb_ref[...].astype(f32)                        # (C+1, C): rows 0..C-1 = Wf, row C = Bf
    m = jnp.dot(pooled, wb[:C, :], preferred_element_type=f32) + wb[C:, :]
    c_att = jax.nn.sigmoid(m)                           # (bn, C)
    if reverse:
        c_att = 1.0 - c_att
    xc = x * c_att[:, :, None]                          # (bn, C, HW)

    # ---------------- Spatial attention ----------------
    avg_s = jnp.mean(xc, axis=1)                        # (bn, HW) sublane reduction
    max_s = jnp.max(xc, axis=1)                         # (bn, HW)
    x2 = jnp.concatenate([avg_s, max_s], axis=1)        # (bn, 2*HW) lane concat
    # 7x7 conv (2->1 channels, padding 3) as a single dense MXU matmul.
    # Conv bias dropped: cancelled by the InstanceNorm mean subtraction below.
    conv = jnp.dot(x2, km_ref[...].astype(f32), preferred_element_type=f32)  # (bn, HW)

    # Double InstanceNorm2d(1, affine=False, eps=1e-5), fused into one pass.
    eps = 1e-5
    mu = jnp.mean(conv, axis=1, keepdims=True)          # (bn, 1)
    d = conv - mu
    var = jnp.mean(d * d, axis=1, keepdims=True)
    scale = jax.lax.rsqrt(var + eps) * jax.lax.rsqrt(var / (var + eps) + eps)
    s_att = jax.nn.sigmoid(d * scale)                   # (bn, HW)
    if reverse:
        s_att = 1.0 - s_att

    # Lane-dense (HW-wide) unmasked store.
    o_ref[...] = (xc * s_att[:, None, :]).astype(o_ref.dtype)


def _conv7x7_as_matrix_np(cw, H, W):
    """Dense (2*H*W, H*W) matrix equivalent to Conv2d(2, 1, kernel=7, padding=3, bias ignored).

    Built once in numpy at parameter-prep time (NOT traced per forward call).
    row index = c*H*W + hq*W + wq (input pixel), col index = hp*W + wp (output pixel).
    """
    # TODO(synk): for H,W >= 32 this O(HW^2) matrix gets large (8 MiB at 32x32);
    # switch to a banded / roll+mask formulation there.
    k = np.asarray(cw, np.float64).reshape(2, 7, 7)
    hi = np.arange(H)
    wi = np.arange(W)
    dy = hi[:, None] - hi[None, :] + 3          # (hq, hp) -> kernel row index
    dx = wi[:, None] - wi[None, :] + 3          # (wq, wp) -> kernel col index
    vy = (dy >= 0) & (dy < 7)
    vx = (dx >= 0) & (dx < 7)
    km = k[:, np.clip(dy, 0, 6)[:, None, :, None],
           np.clip(dx, 0, 6)[None, :, None, :]]                 # (2, H, W, H, W)
    km = km * (vy[:, None, :, None] & vx[None, :, None, :])
    return km.reshape(2 * H * W, H * W)


def prepare_cbam_params(params, H, W, param_dtype=jnp.bfloat16):
    """One-time preprocessing of the PyTorch-layout parameters.

    Returns the packed fused-MLP weights (C+1, C) and the dense conv matrix
    (2*HW, HW), optionally stored in bf16 (halves their DMA / VMEM footprint;
    matmuls still accumulate in f32 on the MXU).
    """
    w1 = np.asarray(params["w1"], np.float64)               # (Cr, C)  Conv2d(C, Cr, 1)
    b1 = np.asarray(params["b1"], np.float64).reshape(-1)   # (Cr,)
    w2 = np.asarray(params["w2"], np.float64)               # (C, Cr)  Conv2d(Cr, C, 1)
    b2 = np.asarray(params["b2"], np.float64).reshape(-1)   # (C,)
    cw = np.asarray(params["cw"], np.float64)                # (2*7*7,) Conv2d(2, 1, 7)
    C = w1.shape[1]

    # Fused MLP affine (LeakyReLU(True) == identity):
    #   mlp(avg)+mlp(max) = (avg+max) @ W1^T @ W2^T + 2*(b1 @ W2^T + b2)
    wf = w1.T @ w2.T                                         # (C, C)
    bf = 2.0 * (b1 @ w2.T + b2)                              # (C,)
    wb = np.concatenate([wf, bf[None, :]], axis=0)           # (C+1, C) packed

    km = _conv7x7_as_matrix_np(cw, H, W)                     # (2*HW, HW); conv bias dropped

    return {
        "wb": jnp.asarray(wb, param_dtype),
        "km": jnp.asarray(km, param_dtype),
        "C": C, "H": H, "W": W,
    }


def _default_batch_block(N):
    """Largest divisor of N giving >=2 grid steps (pipelining + megacore), capped at 128."""
    if N <= 1:
        return 1
    cap = max(1, min(128, N // 2))
    for bn in range(cap, 0, -1):
        if N % bn == 0:
            return bn
    return 1


def cbam_pallas(x, prepped, reverse_attention=False, batch_block=None):
    N, C, H, W = x.shape
    HW = H * W
    wb = prepped["wb"]
    km = prepped["km"]
    assert wb.shape == (C + 1, C) and km.shape == (2 * HW, HW)

    bn = _default_batch_block(N) if batch_block is None else batch_block
    assert N % bn == 0, "batch_block must divide N"

    # Lane-dense view: last dim is H*W (>= 128), trivial contiguous reshape.
    x3 = x.reshape(N, C, HW)

    # VMEM budget: double-buffered in/out blocks + double-buffered weights + f32 temps.
    xb = x.dtype.itemsize
    block_bytes = bn * C * HW * xb
    weight_bytes = km.size * km.dtype.itemsize + wb.size * wb.dtype.itemsize
    needed = 4 * block_bytes + 2 * weight_bytes + 8 * bn * C * HW * 4
    vmem_limit = int(max(32 * 1024 * 1024, min(64 * 1024 * 1024, 2 * needed)))

    cost = pl.CostEstimate(
        flops=int(2 * N * C * C + 2 * N * (2 * HW) * HW + 12 * N * C * HW),
        transcendentals=int(N * (C + HW + 2)),
        bytes_accessed=int(2 * x3.size * xb + weight_bytes),
    )

    kernel = functools.partial(_cbam_kernel, reverse=reverse_attention)
    out3 = pl.pallas_call(
        kernel,
        out_shape=jax.ShapeDtypeStruct((N, C, HW), x.dtype),
        grid=(N // bn,),
        in_specs=[
            pl.BlockSpec((bn, C, HW), lambda i: (i, 0, 0)),      # x (lane-dense)
            pl.BlockSpec((C + 1, C), lambda i: (0, 0)),          # packed [Wf ; Bf]
            pl.BlockSpec((2 * HW, HW), lambda i: (0, 0)),        # dense 7x7 conv matrix
        ],
        out_specs=pl.BlockSpec((bn, C, HW), lambda i: (i, 0, 0)),
        compiler_params=pltpu.CompilerParams(
            dimension_semantics=("parallel",),
            vmem_limit_bytes=vmem_limit,
        ),
        cost_estimate=cost,
    )(x3, wb, km)
    return out3.reshape(N, C, H, W)


def _ref_cbam(x, p, reverse=False):
    """Pure numpy reference matching the PyTorch forward pass (unfused, direct tap loop)."""
    x = x.astype(np.float64)
    N, C, H, W = x.shape
    w1 = p["w1"].astype(np.float64); b1 = p["b1"].astype(np.float64).ravel()
    w2 = p["w2"].astype(np.float64); b2 = p["b2"].astype(np.float64).ravel()
    cw = p["cw"].astype(np.float64).reshape(2, 7, 7); cb = float(p["cb"][0])
    sig = lambda z: 1.0 / (1.0 + np.exp(-z))

    avg = x.mean(axis=(2, 3))
    mx = x.max(axis=(2, 3))

    def mlp(v):
        h = v @ w1.T + b1
        h = np.where(h >= 0, h, 1.0 * h)   # LeakyReLU(negative_slope=1.0) == identity
        return h @ w2.T + b2

    c_att = sig(mlp(avg) + mlp(mx))
    if reverse:
        c_att = 1 - c_att
    xc = x * c_att[:, :, None, None]

    avg_s = xc.mean(axis=1); max_s = xc.max(axis=1)
    x2 = np.stack([avg_s, max_s], axis=1)
    pd = np.pad(x2, ((0, 0), (0, 0), (3, 3), (3, 3)))
    conv = np.full((N, H, W), cb)
    for c in range(2):
        for dy in range(7):
            for dx in range(7):
                conv += cw[c, dy, dx] * pd[:, c, dy:dy + H, dx:dx + W]

    def inorm(s):
        m = s.mean(axis=(1, 2), keepdims=True)
        v = ((s - m) ** 2).mean(axis=(1, 2), keepdims=True)
        return (s - m) / np.sqrt(v + 1e-5)

    s = sig(inorm(inorm(conv)))   # norm applied twice, as in the PyTorch module
    if reverse:
        s = 1 - s
    return (xc * s[:, None, :, :]).astype(np.float32)


if __name__ == "__main__":
    # in_c=32, c_ratio=16 -> hidden = 2 ; input NCHW = (2, 32, 16, 16)
    N, C, H, W, ratio = 2, 32, 16, 16, 16
    Cr = C // ratio

    key = jax.random.PRNGKey(0)
    ks = jax.random.split(key, 7)
    x = jax.random.normal(ks[0], (N, C, H, W), jnp.float32)
    params = dict(
        w1=jax.random.normal(ks[1], (Cr, C), jnp.float32) * 0.2,   # Conv2d(C, Cr, 1)
        b1=jax.random.normal(ks[2], (Cr, 1), jnp.float32) * 0.1,
        w2=jax.random.normal(ks[3], (C, Cr), jnp.float32) * 0.2,   # Conv2d(Cr, C, 1)
        b2=jax.random.normal(ks[4], (C, 1), jnp.float32) * 0.1,
        cw=jax.random.normal(ks[5], (2 * 7 * 7,), jnp.float32) * 0.1,  # Conv2d(2,1,7) flat
        cb=jax.random.normal(ks[6], (1,), jnp.float32) * 0.1,
    )
    np_params = {k: np.asarray(v) for k, v in params.items()}
    ref = _ref_cbam(np.asarray(x), np_params, reverse=False)

    # f32 weight path: the MLP fusion / conv-bias drop / fused double-InstanceNorm
    # are exact, so this must match the unfused reference tightly.
    prepped_f32 = prepare_cbam_params(params, H, W, param_dtype=jnp.float32)
    out_f32 = jax.block_until_ready(cbam_pallas(x, prepped_f32, reverse_attention=False))
    np.testing.assert_allclose(np.asarray(out_f32), ref, rtol=2e-3, atol=2e-3)

    # bf16 weight path (default): halves the conv-matrix / MLP-weight DMA; looser tol.
    prepped_bf16 = prepare_cbam_params(params, H, W, param_dtype=jnp.bfloat16)
    out_bf16 = jax.block_until_ready(cbam_pallas(x, prepped_bf16, reverse_attention=False))
    np.testing.assert_allclose(np.asarray(out_bf16), ref, rtol=2e-2, atol=2e-2)

    # TODO(synk): the cv2 visualization block after the first `return x` in CBAM.forward
    # is dead code and is intentionally not implemented.
    print("KERNEL_OK")
</pallas_src>

<mosaic_0001>
module attributes {stable_mosaic.version = 11 : i64} {
  func.func @_cbam_kernel(%arg0: i32, %arg1: memref<1x32x256xf32, #tpu.memory_space<vmem>>, %arg2: memref<33x32xf32, #tpu.memory_space<vmem>>, %arg3: memref<512x256xf32, #tpu.memory_space<vmem>>, %arg4: memref<1x32x256xf32, #tpu.memory_space<vmem>>) attributes {dimension_semantics = [#tpu.dimension_semantics<parallel>], iteration_bounds = array<i64: 2>, scalar_prefetch = 0 : i64, scratch_operands = 0 : i64, tpu.core_type = #tpu.core_type<tc>, window_params = [{transform_indices = @transform_0, window_bounds = array<i64: 1, 32, 256>}, {pipeline_mode = #tpu.pipeline_mode<synchronous>, transform_indices = @transform_1, window_bounds = array<i64: 33, 32>}, {pipeline_mode = #tpu.pipeline_mode<synchronous>, transform_indices = @transform_2, window_bounds = array<i64: 512, 256>}, {transform_indices = @transform_3, window_bounds = array<i64: 1, 32, 256>}]} {
    %c0 = arith.constant 0 : index
    %c0_0 = arith.constant 0 : index
    %c0_1 = arith.constant 0 : index
    %0 = vector.load %arg1[%c0, %c0_0, %c0_1] : memref<1x32x256xf32, #tpu.memory_space<vmem>>, vector<1x32x256xf32>
    %cst = arith.constant dense<0.000000e+00> : vector<1x32xf32>
    %1 = vector.multi_reduction <add>, %0, %cst [2] : vector<1x32x256xf32> to vector<1x32xf32>
    %cst_2 = arith.constant 2.560000e+02 : f32
    %2 = vector.broadcast %cst_2 : f32 to vector<1x32xf32>
    %3 = arith.divf %1, %2 : vector<1x32xf32>
    %cst_3 = arith.constant dense<0xFF800000> : vector<1x32xf32>
    %4 = vector.multi_reduction <maximumf>, %0, %cst_3 [2] : vector<1x32x256xf32> to vector<1x32xf32>
    %5 = arith.addf %3, %4 : vector<1x32xf32>
    %c0_4 = arith.constant 0 : index
    %c0_5 = arith.constant 0 : index
    %6 = vector.load %arg2[%c0_4, %c0_5] : memref<33x32xf32, #tpu.memory_space<vmem>>, vector<33x32xf32>
    %7 = vector.extract_strided_slice %6 {offsets = [0, 0], sizes = [32, 32], strides = [1, 1]} : vector<33x32xf32> to vector<32x32xf32>
    %cst_6 = arith.constant dense<0.000000e+00> : vector<1x32xf32>
    %8 = tpu.matmul %5, %7, %cst_6 {dimension_numbers = #tpu.dot_dimension_numbers<[1], [0], [0], [1], [0, 0, 1, 1], [], []>} : vector<1x32xf32>, vector<32x32xf32>, vector<1x32xf32> -> vector<1x32xf32>
    %9 = vector.extract_strided_slice %6 {offsets = [32, 0], sizes = [1, 32], strides = [1, 1]} : vector<33x32xf32> to vector<1x32xf32>
    %10 = arith.addf %8, %9 : vector<1x32xf32>
    %11 = arith.negf %10 : vector<1x32xf32>
    %12 = math.exp %11 : vector<1x32xf32>
    %cst_7 = arith.constant 1.000000e+00 : f32
    %13 = vector.broadcast %cst_7 : f32 to vector<1x32xf32>
    %14 = arith.addf %13, %12 : vector<1x32xf32>
    %15 = arith.divf %13, %14 : vector<1x32xf32>
    %16 = vector.shape_cast %15 : vector<1x32xf32> to vector<1x32x1xf32>
    %17 = vector.broadcast %16 : vector<1x32x1xf32> to vector<1x32x256xf32>
    %18 = arith.mulf %0, %17 : vector<1x32x256xf32>
    %cst_8 = arith.constant dense<0.000000e+00> : vector<1x256xf32>
    %19 = vector.multi_reduction <add>, %18, %cst_8 [1] : vector<1x32x256xf32> to vector<1x256xf32>
    %cst_9 = arith.constant 3.200000e+01 : f32
    %20 = vector.broadcast %cst_9 : f32 to vector<1x256xf32>
    %21 = arith.divf %19, %20 : vector<1x256xf32>
    %cst_10 = arith.constant dense<0xFF800000> : vector<1x256xf32>
    %22 = vector.multi_reduction <maximumf>, %18, %cst_10 [1] : vector<1x32x256xf32> to vector<1x256xf32>
    %23 = tpu.concatenate %21, %22 in 1 : vector<1x256xf32>, vector<1x256xf32> -> vector<1x512xf32>
    %c0_11 = arith.constant 0 : index
    %c0_12 = arith.constant 0 : index
    %24 = vector.load %arg3[%c0_11, %c0_12] : memref<512x256xf32, #tpu.memory_space<vmem>>, vector<512x256xf32>
    %cst_13 = arith.constant dense<0.000000e+00> : vector<1x256xf32>
    %25 = tpu.matmul %23, %24, %cst_13 {dimension_numbers = #tpu.dot_dimension_numbers<[1], [0], [0], [1], [0, 0, 1, 1], [], []>} : vector<1x512xf32>, vector<512x256xf32>, vector<1x256xf32> -> vector<1x256xf32>
    %cst_14 = arith.constant dense<0.000000e+00> : vector<1xf32>
    %26 = vector.multi_reduction <add>, %25, %cst_14 [1] : vector<1x256xf32> to vector<1xf32>
    %27 = vector.shape_cast %26 : vector<1xf32> to vector<1x1xf32>
    %cst_15 = arith.constant 2.560000e+02 : f32
    %28 = vector.broadcast %cst_15 : f32 to vector<1x1xf32>
    %29 = arith.divf %27, %28 : vector<1x1xf32>
    %30 = vector.broadcast %29 : vector<1x1xf32> to vector<1x256xf32>
    %31 = arith.subf %25, %30 : vector<1x256xf32>
    %32 = arith.mulf %31, %31 : vector<1x256xf32>
    %cst_16 = arith.constant dense<0.000000e+00> : vector<1xf32>
    %33 = vector.multi_reduction <add>, %32, %cst_16 [1] : vector<1x256xf32> to vector<1xf32>
    %34 = vector.shape_cast %33 : vector<1xf32> to vector<1x1xf32>
    %cst_17 = arith.constant 2.560000e+02 : f32
    %35 = vector.broadcast %cst_17 : f32 to vector<1x1xf32>
    %36 = arith.divf %34, %35 : vector<1x1xf32>
    %cst_18 = arith.constant 9.99999974E-6 : f32
    %37 = vector.broadcast %cst_18 : f32 to vector<1x1xf32>
    %38 = arith.addf %36, %37 : vector<1x1xf32>
    %39 = math.rsqrt %38 : vector<1x1xf32>
    %cst_19 = arith.constant 9.99999974E-6 : f32
    %40 = vector.broadcast %cst_19 : f32 to vector<1x1xf32>
    %41 = arith.addf %36, %40 : vector<1x1xf32>
    %42 = arith.divf %36, %41 : vector<1x1xf32>
    %cst_20 = arith.constant 9.99999974E-6 : f32
    %43 = vector.broadcast %cst_20 : f32 to vector<1x1xf32>
    %44 = arith.addf %42, %43 : vector<1x1xf32>
    %45 = math.rsqrt %44 : vector<1x1xf32>
    %46 = arith.mulf %39, %45 : vector<1x1xf32>
    %47 = vector.broadcast %46 : vector<1x1xf32> to vector<1x256xf32>
    %48 = arith.mulf %31, %47 : vector<1x256xf32>
    %49 = arith.negf %48 : vector<1x256xf32>
    %50 = math.exp %49 : vector<1x256xf32>
    %cst_21 = arith.constant 1.000000e+00 : f32
    %51 = vector.broadcast %cst_21 : f32 to vector<1x256xf32>
    %52 = arith.addf %51, %50 : vector<1x256xf32>
    %53 = arith.divf %51, %52 : vector<1x256xf32>
    %54 = vector.shape_cast %53 : vector<1x256xf32> to vector<1x1x256xf32>
    %55 = vector.broadcast %54 : vector<1x1x256xf32> to vector<1x32x256xf32>
    %56 = arith.mulf %18, %55 : vector<1x32x256xf32>
    %c0_22 = arith.constant 0 : index
    %c0_23 = arith.constant 0 : index
    %c0_24 = arith.constant 0 : index
    %57 = vector.load %arg4[%c0_22, %c0_23, %c0_24] : memref<1x32x256xf32, #tpu.memory_space<vmem>>, vector<1x32x256xf32>
    tpu.vector_store %arg4[%c0_22, %c0_23, %c0_24], %56 {strides = array<i32>} : memref<1x32x256xf32, #tpu.memory_space<vmem>>, vector<1x32x256xf32>,
    return
  }
  func.func @transform_0(%arg0: i32) -> (i32, i32, i32) {
    %c0_i32 = arith.constant 0 : i32
    %c0_i32_0 = arith.constant 0 : i32
    %c0_i32_1 = arith.constant 0 : i32
    return %arg0, %c0_i32, %c0_i32_0 : i32, i32, i32
  }
  func.func @transform_1(%arg0: i32) -> (i32, i32) {
    %c0_i32 = arith.constant 0 : i32
    %c0_i32_0 = arith.constant 0 : i32
    %c0_i32_1 = arith.constant 0 : i32
    return %c0_i32, %c0_i32_0 : i32, i32
  }
  func.func @transform_2(%arg0: i32) -> (i32, i32) {
    %c0_i32 = arith.constant 0 : i32
    %c0_i32_0 = arith.constant 0 : i32
    %c0_i32_1 = arith.constant 0 : i32
    return %c0_i32, %c0_i32_0 : i32, i32
  }
  func.func @transform_3(%arg0: i32) -> (i32, i32, i32) {
    %c0_i32 = arith.constant 0 : i32
    %c0_i32_0 = arith.constant 0 : i32
    %c0_i32_1 = arith.constant 0 : i32
    return %arg0, %c0_i32, %c0_i32_0 : i32, i32, i32
  }
}

</mosaic_0001>

<llo_original>
// kernel: tpu_custom_call.1
$region0: #{tpu_custom_call.1}
  #allocation0 [shape = 'u32[]', space=smem, size = 0x4, offset = 0x4, fixed_abs, tag = 'smem constant byte address 0x4 - core index']
  #allocation1 [shape = 'u32[144,128]{1,0:T(1,128)}', space=vmem, size = 0x12000, scoped, tag = 'internal scratch']
  %s0 = inlined_call_operand.hbm [shape: f32[2,32,256], index: 0, kind: input, shape index: {}]
  %s1 = inlined_call_operand.vmem [shape: f32[33,32], index: 1, kind: input, shape index: {}]
  %s2 = inlined_call_operand.hbm [shape: f32[512,256], index: 2, kind: input, shape index: {}]
  %s3 = inlined_call_operand.hbm [shape: f32[2,32,256], index: 3, kind: output, shape index: {}]
  %s4 = sld [smem:[#allocation0]]
  $region53: #{tpu_custom_call.1} parent=0
    _
  %s6 = ssub.s32 1, %s4
  %s7 = scalar_select 0, %s6, %s4
  $region1: #{tpu_custom_call.1} parent=0
    #allocation2 [shape = 'u8[65536]{0}', space=vmem, size = 0x10000, scoped, tag = 'input window, operand 0']
    #allocation3 [shape = 's32[2]{0}', space=sflag, size = 0x8, scoped, tag = 'scoped memory for tpu_custom_call.1']
    #allocation4 [shape = 's32[2]{0}', space=sflag, size = 0x8, scoped, tag = 'scoped memory for tpu_custom_call.1']
    #allocation5 [shape = 'u8[524288]{0}', space=vmem, size = 0x80000, scoped, tag = 'input window, operand 2, single buffered']
    #allocation6 [shape = 's32[1]{0}', space=sflag, size = 0x4, scoped, tag = 'scoped memory for tpu_custom_call.1']
    #allocation7 [shape = 'u8[65536]{0}', space=vmem, size = 0x10000, scoped, tag = 'output window, operand 0']
    %8 = vsyncpa [#allocation3], 0
    %s9 = scalar_lea.sflag [#allocation3], 1
    %10 = vsyncpa %s9, 0
    %11 = vsyncpa [#allocation6], 0
    %12 = vsyncpa [#allocation4], 0
    %s13 = scalar_lea.sflag [#allocation4], 1
    %14 = vsyncpa %s13, 0
    loop: start=0, step=1, limit=4
    $region2: #{tpu_custom_call.1} parent=1 // loop_pre_header
      _
    $region3: #{tpu_custom_call.1} parent=1 // loop_header
      %s16 = sphi 0, %s20
      %p17 = scmp.ge.s32.totalorder %s16, 4
      %s26 = sphi 0, %s28
      %s29 = sphi 0, %s26
      %s30 = sphi 0, %s29
      %s46 = sphi 0, %s30
      %s50 = sphi 0, %s50
      %s52 = sphi 0, %s50
      %s53 = sphi 0, %s52
      %s67 = sphi 0, %s53
      %s71 = sphi 0, %s71
      %s73 = sphi 0, %s71
      %s74 = sphi 0, %s73
      %s88 = sphi 0, %s74
      %s94 = sphi 0, %s96
      %s97 = sphi 0, %s94
      %s98 = sphi 0, %s97
      %s114 = sphi 0, %s98
    $region4: #{tpu_custom_call.1} parent=1 // loop_header_branch
      %19 = sbr.rel (%p17) target = $region8
    $region5: #{tpu_custom_call.1} parent=1 // loop_body
      %s21 = ssub.s32 %s16, 1
      %s22 = ssub.s32 %s16, 2
      %s23 = sadd.s32 %s16, 1
      %s24 = ssub.s32 %s16, %s23
      %p25 = scmp.eq.s32.totalorder %s24, 0
      %s27 = sadd.s32 %s26, 1
      %s28 = scalar_select %p25, %s26, %s27
      %p31 = pneg %p25
      %p32 = scmp.eq.s32.totalorder %s16, 1
      %p33 = por %p31, %p32
      %p34 = scmp.ne.s32.totalorder %s26, %s29
      %p35 = scmp.eq.s32.totalorder %s16, 0
      %p36 = por %p34, %p35
      %p37 = scmp.ne.s32.totalorder %s26, %s29
      %p38 = scmp.eq.s32.totalorder %s21, 1
      %p39 = por %p37, %p38
      %p40 = scmp.ne.s32.totalorder %s29, %s30
      %p41 = scmp.eq.s32.totalorder %s21, 0
      %p42 = por %p40, %p41
      %p43 = scmp.ne.s32.totalorder %s29, %s30
      %p44 = scmp.eq.s32.totalorder %s22, 1
      %p45 = por %p43, %p44
      %p47 = scmp.ne.s32.totalorder %s30, %s46
      %p48 = scmp.eq.s32.totalorder %s22, 0
      %p49 = por %p47, %p48
      %s51 = sadd.s32 %s50, 1
      %p54 = scmp.eq.s32.totalorder %s16, 1
      %p55 = scmp.ne.s32.totalorder %s50, %s52
      %p56 = scmp.eq.s32.totalorder %s16, 0
      %p57 = por %p55, %p56
      %p58 = scmp.ne.s32.totalorder %s50, %s52
      %p59 = scmp.eq.s32.totalorder %s21, 1
      %p60 = por %p58, %p59
      %p61 = scmp.ne.s32.totalorder %s52, %s53
      %p62 = scmp.eq.s32.totalorder %s21, 0
      %p63 = por %p61, %p62
      %p64 = scmp.ne.s32.totalorder %s52, %s53
      %p65 = scmp.eq.s32.totalorder %s22, 1
      %p66 = por %p64, %p65
      %p68 = scmp.ne.s32.totalorder %s53, %s67
      %p69 = scmp.eq.s32.totalorder %s22, 0
      %p70 = por %p68, %p69
      %s72 = sadd.s32 %s71, 1
      %p75 = scmp.eq.s32.totalorder %s16, 1
      %p76 = scmp.ne.s32.totalorder %s71, %s73
      %p77 = scmp.eq.s32.totalorder %s16, 0
      %p78 = por %p76, %p77
      %p79 = scmp.ne.s32.totalorder %s71, %s73
      %p80 = scmp.eq.s32.totalorder %s21, 1
      %p81 = por %p79, %p80
      %p82 = scmp.ne.s32.totalorder %s73, %s74
      %p83 = scmp.eq.s32.totalorder %s21, 0
      %p84 = por %p82, %p83
      %p85 = scmp.ne.s32.totalorder %s73, %s74
      %p86 = scmp.eq.s32.totalorder %s22, 1
      %p87 = por %p85, %p86
      %p89 = scmp.ne.s32.totalorder %s74, %s88
      %p90 = scmp.eq.s32.totalorder %s22, 0
      %p91 = por %p89, %p90
      %s92 = ssub.s32 %s16, %s23
      %p93 = scmp.eq.s32.totalorder %s92, 0
      %s95 = sadd.s32 %s94, 1
      %s96 = scalar_select %p93, %s94, %s95
      %p99 = pneg %p93
      %p100 = scmp.eq.s32.totalorder %s16, 1
      %p101 = por %p99, %p100
      %p102 = scmp.ne.s32.totalorder %s94, %s97
      %p103 = scmp.eq.s32.totalorder %s16, 0
      %p104 = por %p102, %p103
      %p105 = scmp.ne.s32.totalorder %s94, %s97
      %p106 = scmp.eq.s32.totalorder %s21, 1
      %p107 = por %p105, %p106
      %p108 = scmp.ne.s32.totalorder %s97, %s98
      %p109 = scmp.eq.s32.totalorder %s21, 0
      %p110 = por %p108, %p109
      %p111 = scmp.ne.s32.totalorder %s97, %s98
      %p112 = scmp.eq.s32.totalorder %s22, 1
      %p113 = por %p111, %p112
      %p115 = scmp.ne.s32.totalorder %s98, %s114
      %p116 = scmp.eq.s32.totalorder %s22, 0
      %p117 = por %p115, %p116
      %p118 = scmp.le.s32.totalorder 1, %s16
      %p119 = scmp.lt.s32.totalorder %s16, 3
      %p120 = pnand %p118, %p119
      %p121 = pneg %p120
      // Predicated region
      $region9: #{tpu_custom_call.1} parent=5 // pred_check
        _
      $region10: #{tpu_custom_call.1} parent=5 // pred_check_branch
        %123 = sbr.rel (%p120) target = $region12
      $region11: #{tpu_custom_call.1} parent=5 // pred_region
        %s124 = ssub.s32 %s16, 1
        // Predicated region
        $region13: #{tpu_custom_call.1} parent=11 // pred_check
          %p125 = pneg %p63
        $region14: #{tpu_custom_call.1} parent=11 // pred_check_branch
          %127 = sbr.rel (%p125) target = $region16
        $region15: #{tpu_custom_call.1} parent=11 // pred_region
          _
        $region16: #{tpu_custom_call.1} parent=11 // pred_fallthru
          _
        // Predicated region
        $region17: #{tpu_custom_call.1} parent=11 // pred_check
          %p128 = pneg %p84
        $region18: #{tpu_custom_call.1} parent=11 // pred_check_branch
          %130 = sbr.rel (%p128) target = $region20
        $region19: #{tpu_custom_call.1} parent=11 // pred_region
          %s132 = ssub.s32 16384, 16384
          %133 = vsyncadd [#allocation6], %s132
          %s134 = sshll.u32 [#allocation5], 4
          %s135 = int_to_ptr.vmem [resolvable:$true] %s134
          %140 = dma.hbm_to_vmem [thread:$0]  %s2, 16384, %s135, [#allocation6], 256, 256, 16
        $region20: #{tpu_custom_call.1} parent=11 // pred_fallthru
          _
      $region12: #{tpu_custom_call.1} parent=5 // pred_fallthru
        _
      %p141 = scmp.lt.s32.totalorder %s16, 2
      // Predicated region
      $region21: #{tpu_custom_call.1} parent=5 // pred_check
        %p142 = pneg %p141
      $region22: #{tpu_custom_call.1} parent=5 // pred_check_branch
        %144 = sbr.rel (%p142) target = $region24
      $region23: #{tpu_custom_call.1} parent=5 // pred_region
        // Predicated region
        $region25: #{tpu_custom_call.1} parent=23 // pred_check
          %p145 = pneg %p36
        $region26: #{tpu_custom_call.1} parent=23 // pred_check_branch
          %147 = sbr.rel (%p145) target = $region28
        $region27: #{tpu_custom_call.1} parent=23 // pred_region
          %s148 = sand.u32 %s26, 1
          %s149 = scalar_lea.sflag [#allocation3], %s148
          %s150 = sand.u32 %s26, 1
          %s151 = smul.addr %s150, 64
          %s152 = scalar_lea.vmem [#allocation2], %s151
          %s154 = ssub.s32 1024, 1024
          %155 = vsyncadd %s149, %s154
          %s156 = smul.addr %s16, 8
          %s157 = smul.addr %s156, 128
          %s158 = scalar_lea.hbm %s0, %s157
          %s159 = sshll.u32 %s152, 4
          %s160 = int_to_ptr.vmem [resolvable:$true] %s159
          %165 = dma.hbm_to_vmem [thread:$0]  %s158, 1024, %s160, %s149, 256, 256, 16
        $region28: #{tpu_custom_call.1} parent=23 // pred_fallthru
          _
      $region24: #{tpu_custom_call.1} parent=5 // pred_fallthru
        _
      %p166 = scmp.le.s32.totalorder 1, %s16
      %p167 = scmp.lt.s32.totalorder %s16, 3
      %p168 = pnand %p166, %p167
      %p169 = pneg %p168
      // Predicated region
      $region29: #{tpu_custom_call.1} parent=5 // pred_check
        _
      $region30: #{tpu_custom_call.1} parent=5 // pred_check_branch
        %171 = sbr.rel (%p168) target = $region32
      $region31: #{tpu_custom_call.1} parent=5 // pred_region
        %s172 = ssub.s32 %s16, 1
        %s173 = sand.u32 %s29, 1
        %s174 = scalar_lea.sflag [#allocation3], %s173
        %s175 = sand.u32 %s29, 1
        %s176 = smul.addr %s175, 64
        %s177 = scalar_lea.vmem [#allocation2], %s176
        // Predicated region
        $region33: #{tpu_custom_call.1} parent=31 // pred_check
          %p178 = pneg %p42
        $region34: #{tpu_custom_call.1} parent=31 // pred_check_branch
          %180 = sbr.rel (%p178) target = $region36
        $region35: #{tpu_custom_call.1} parent=31 // pred_region
          %181 = dma.done %s174, 1024
        $region36: #{tpu_custom_call.1} parent=31 // pred_fallthru
          _
        // Predicated region
        $region37: #{tpu_custom_call.1} parent=31 // pred_check
          %p182 = pneg %p84
        $region38: #{tpu_custom_call.1} parent=31 // pred_check_branch
          %184 = sbr.rel (%p182) target = $region40
        $region39: #{tpu_custom_call.1} parent=31 // pred_region
          %185 = dma.done [#allocation6], 16384
        $region40: #{tpu_custom_call.1} parent=31 // pred_fallthru
          _
        %s186 = sand.u32 %s29, 1
        %s187 = scalar_lea.sflag [#allocation3], %s186
        %s188 = sand.u32 %s29, 1
        %s189 = smul.addr %s188, 64
        %s190 = scalar_lea.vmem [#allocation2], %s189
        %p191 = pneg %p42
        %p192 = pneg %p39
        %p193 = pneg %p63
        %p194 = pneg %p60
        %p195 = pneg %p84
        %p196 = pneg %p81
        %p197 = pneg %p110
        %p198 = pneg %p107
        %s199 = sand.u32 %s97, 1
        %s200 = scalar_lea.sflag [#allocation4], %s199
        %s201 = sand.u32 %s97, 1
        %s202 = smul.addr %s201, 64
        %s203 = scalar_lea.vmem [#allocation7], %s202
        %v204 = vld [vmem:[%s177] sm:$0xff]
        %v205 = vld [vmem:[%s177 + $0x8] sm:$0xff]
        %v206 = vld [vmem:[%s177 + $0x10] sm:$0xff]
        %v207 = vld [vmem:[%s177 + $0x18] sm:$0xff]
        %v208 = vld [vmem:[%s177 + $0x20] sm:$0xff]
        %v209 = vld [vmem:[%s177 + $0x28] sm:$0xff]
        %v210 = vld [vmem:[%s177 + $0x30] sm:$0xff]
        %v211 = vld [vmem:[%s177 + $0x38] sm:$0xff]
        %v212 = vadd.f32 %v204, %v205
        %213 = vadd.xlane.f32.xlu0 %v212
        %v214 = vpop.xlane.xlu0 %213
        %v215 = vadd.f32 %v206, %v207
        %216 = vadd.xlane.f32.xlu0 %v215
        %v217 = vpop.xlane.xlu0 %216
        %v218 = vadd.f32 %v208, %v209
        %219 = vadd.xlane.f32.xlu0 %v218
        %v220 = vpop.xlane.xlu0 %219
        %v221 = vadd.f32 %v210, %v211
        %222 = vadd.xlane.f32.xlu0 %v221
        %v223 = vpop.xlane.xlu0 %222
        %v224 = vrcp.pop 256.0
        %v225 = vmul.f32 %v214, %v224
        %v226 = vmul.f32 %v217, %v224
        %v227 = vmul.f32 %v220, %v224
        %v228 = vmul.f32 %v223, %v224
        %v229 = vmax.f32 %v204, %v205
        %230 = vmax.xlane.f32.xlu0 %v229
        %v231 = vpop.xlane.xlu0 %230
        %v232 = vmax.f32 %v206, %v207
        %233 = vmax.xlane.f32.xlu0 %v232
        %v234 = vpop.xlane.xlu0 %233
        %v235 = vmax.f32 %v208, %v209
        %236 = vmax.xlane.f32.xlu0 %v235
        %v237 = vpop.xlane.xlu0 %236
        %v238 = vmax.f32 %v210, %v211
        %239 = vmax.xlane.f32.xlu0 %v238
        %v240 = vpop.xlane.xlu0 %239
        %v241 = vadd.f32 %v225, %v231
        %v242 = vadd.f32 %v226, %v234
        %v243 = vadd.f32 %v227, %v237
        %v244 = vadd.f32 %v228, %v240
        %v245 = vld [vmem:[%s1] sm:$0xff]
        %v246 = vld [vmem:[%s1 + $0x8] sm:$0xff]
        %v247 = vld [vmem:[%s1 + $0x10] sm:$0xff]
        %v248 = vld [vmem:[%s1 + $0x18] sm:$0xff]
        %v249 = vld [vmem:[%s1 + $0x20] sm:$0x1]
        %v254 = vlaneseq
        %v255 = vand.u32 %v254, 127
        %v256 = vlaneseq
        %v257 = vshrl.u32 %v256, 7
        %v258 = vsub.s32 %v255, %v257
        %v259 = vrot.slane %v241, %v258
        %v260 = vadd.s32 %v255, 4294967288
        %v261 = vlaneseq
        %v262 = vshrl.u32 %v261, 7
        %v263 = vsub.s32 %v260, %v262
        %v264 = vrot.slane %v242, %v263
        %vm265 = vcmask 130112
        %v266 = vsel %vm265, %v264, %v259
        %v267 = vadd.s32 %v255, 4294967280
        %v268 = vlaneseq
        %v269 = vshrl.u32 %v268, 7
        %v270 = vsub.s32 %v267, %v269
        %v271 = vrot.slane %v243, %v270
        %vm272 = vcmask 195712
        %v273 = vsel %vm272, %v271, %v266
        %v274 = vadd.s32 %v255, 4294967272
        %v275 = vlaneseq
        %v276 = vshrl.u32 %v275, 7
        %v277 = vsub.s32 %v274, %v276
        %v278 = vrot.slane %v244, %v277
        %vm279 = vcmask 261312
        %v280 = vsel %vm279, %v278, %v273
        %vm281 = vcmask 261120
        %v282 = vsel %vm281, %v280, 0
        %284 = vmatprep.subr.mxu0 0.0
        %285 = vmatpush1.msra.mxu0 0.0
        %286 = vmatprep.subr.mxu0 0.0
        %287 = vmatpush1.msra.mxu0 0.0
        %288 = vmatprep.subr.mxu0 0.0
        %289 = vmatpush1.msra.mxu0 0.0
        %290 = vmatprep.subr.mxu0 0.0
        %291 = vmatpush1.msra.mxu0 0.0
        %292 = vmatprep.subr.mxu0 0.0
        %293 = vmatpush1.msra.mxu0 0.0
        %294 = vmatprep.subr.mxu0 0.0
        %295 = vmatpush1.msra.mxu0 0.0
        %296 = vmatprep.subr.mxu0 0.0
        %297 = vmatpush1.msra.mxu0 0.0
        %298 = vmatprep.subr.mxu0 0.0
        %299 = vmatpush1.msra.mxu0 0.0
        %300 = vmatprep.subr.mxu0 0.0
        %301 = vmatpush1.msra.mxu0 0.0
        %302 = vmatprep.subr.mxu0 0.0
        %303 = vmatpush1.msra.mxu0 0.0
        %304 = vmatprep.subr.mxu0 0.0
        %305 = vmatpush1.msra.mxu0 0.0
        %306 = vmatprep.subr.mxu0 0.0
        %307 = vmatpush1.msra.mxu0 0.0
        %308 = vmatprep.subr.mxu0 0.0
        %309 = vmatpush1.msra.mxu0 %v248
        %310 = vmatprep.subr.mxu0 0.0
        %311 = vmatpush1.msra.mxu0 %v247
        %312 = vmatprep.subr.mxu0 0.0
        %313 = vmatpush1.msra.mxu0 %v246
        %314 = vmatprep.subr.mxu0 0.0
        %315 = vmatpush1.msra.mxu0 %v245
        %316 = vmatprep.subr.mxu0 0.0
        %317 = vmatpush2.msra.mxu0 0.0
        %318 = vmatprep.subr.mxu0 0.0
        %319 = vmatpush2.msra.mxu0 0.0
        %320 = vmatprep.subr.mxu0 0.0
        %321 = vmatpush2.msra.mxu0 0.0
        %322 = vmatprep.subr.mxu0 0.0
        %323 = vmatpush2.msra.mxu0 0.0
        %324 = vmatprep.subr.mxu0 0.0
        %325 = vmatpush2.msra.mxu0 0.0
        %326 = vmatprep.subr.mxu0 0.0
        %327 = vmatpush2.msra.mxu0 0.0
        %328 = vmatprep.subr.mxu0 0.0
        %329 = vmatpush2.msra.mxu0 0.0
        %330 = vmatprep.subr.mxu0 0.0
        %331 = vmatpush2.msra.mxu0 0.0
        %332 = vmatprep.subr.mxu0 0.0
        %333 = vmatpush2.msra.mxu0 0.0
        %334 = vmatprep.subr.mxu0 0.0
        %335 = vmatpush2.msra.mxu0 0.0
        %336 = vmatprep.subr.mxu0 0.0
        %337 = vmatpush2.msra.mxu0 0.0
        %338 = vmatprep.subr.mxu0 0.0
        %339 = vmatpush2.msra.mxu0 0.0
        %340 = vmatprep.subr.mxu0 0.0
        %341 = vmatpush2.msra.mxu0 0.0
        %342 = vmatprep.subr.mxu0 0.0
        %343 = vmatpush2.msra.mxu0 0.0
        %344 = vmatprep.subr.mxu0 0.0
        %345 = vmatpush2.msra.mxu0 0.0
        %346 = vmatprep.subr.mxu0 0.0
        %347 = vmatpush2.msra.mxu0 0.0
        %348 = vmatprep.mubr.f32.mxu0 0.0
        %349 = vmatmul.mubr.f32.gmra.mxu0 %v282
        %v350 = vpop.f32.mrf.mxu0
        %v351 = vadd.f32 %v249, %v350
        %v352 = vpop.f32.mrf.mxu0
        %353 = vdwg.mxu0
        %v354 = vxor.u32 %v351, 2147483648
        %v355 = vmul.f32 %v354, 1.442695
        %v356 = vpow.pop %v355
        %v357 = vadd.f32 %v356, 1.0
        %v358 = vrcp.pop %v357
        %v359 = vmul.f32 1.0, %v358
        %v360 = vlaneseq
        %v361 = vshrl.u32 %v360, 7
        %v362 = vsub.s32 0, %v361
        %v363 = vrot.slane %v359, %v362
        %365 = vbcast.lane.b32.xlu0 %v363, 256
        %v366 = vpop.permute.xlu0 %365
        %s368 = sor.u32 256, 8
        %369 = vbcast.lane.b32.xlu0 %v363, %s368
        %v370 = vpop.permute.xlu0 %369
        %s372 = sor.u32 256, 16
        %373 = vbcast.lane.b32.xlu0 %v363, %s372
        %v374 = vpop.permute.xlu0 %373
        %s376 = sor.u32 256, 24
        %377 = vbcast.lane.b32.xlu0 %v363, %s376
        %v378 = vpop.permute.xlu0 %377
        %v379 = vmul.f32 %v204, %v366
        %v380 = vmul.f32 %v205, %v366
        %v381 = vmul.f32 %v206, %v370
        %v382 = vmul.f32 %v207, %v370
        %v383 = vmul.f32 %v208, %v374
        %v384 = vmul.f32 %v209, %v374
        %v385 = vmul.f32 %v210, %v378
        %v386 = vmul.f32 %v211, %v378
        %v387 = vadd.f32 %v379, %v381
        %v388 = vadd.f32 %v387, %v383
        %v389 = vadd.f32 %v388, %v385
        %v390 = vrot.slane %v389, 4
        %v391 = vadd.f32 %v389, %v390
        %v392 = vrot.slane %v391, 2
        %v393 = vadd.f32 %v391, %v392
        %v394 = vrot.slane %v393, 1
        %v395 = vadd.f32 %v393, %v394
        %v396 = vadd.f32 %v380, %v382
        %v397 = vadd.f32 %v396, %v384
        %v398 = vadd.f32 %v397, %v386
        %v399 = vrot.slane %v398, 4
        %v400 = vadd.f32 %v398, %v399
        %v401 = vrot.slane %v400, 2
        %v402 = vadd.f32 %v400, %v401
        %v403 = vrot.slane %v402, 1
        %v404 = vadd.f32 %v402, %v403
        %v405 = vrcp.pop 32.0
        %v406 = vmul.f32 %v395, %v405
        %v407 = vmul.f32 %v404, %v405
        %v408 = vmax.f32 %v379, %v383
        %v409 = vmax.f32 %v381, %v385
        %v410 = vmax.f32 %v408, %v409
        %v411 = vrot.slane %v410, 4
        %v412 = vmax.f32 %v410, %v411
        %v413 = vrot.slane %v412, 2
        %v414 = vmax.f32 %v412, %v413
        %v415 = vrot.slane %v414, 1
        %v416 = vmax.f32 %v414, %v415
        %v417 = vmax.f32 %v380, %v384
        %v418 = vmax.f32 %v382, %v386
        %v419 = vmax.f32 %v417, %v418
        %v420 = vrot.slane %v419, 4
        %v421 = vmax.f32 %v419, %v420
        %v422 = vrot.slane %v421, 2
        %v423 = vmax.f32 %v421, %v422
        %v424 = vrot.slane %v423, 1
        %v425 = vmax.f32 %v423, %v424
        %v426 = vld [vmem:[#allocation5] sm:$0xff]
        %v427 = vld [vmem:[#allocation5 + $0x8] sm:$0xff]
        %v428 = vld [vmem:[#allocation5 + $0x10] sm:$0xff]
        %v429 = vld [vmem:[#allocation5 + $0x18] sm:$0xff]
        %v430 = vld [vmem:[#allocation5 + $0x20] sm:$0xff]
        %v431 = vld [vmem:[#allocation5 + $0x28] sm:$0xff]
        %v432 = vld [vmem:[#allocation5 + $0x30] sm:$0xff]
        %v433 = vld [vmem:[#allocation5 + $0x38] sm:$0xff]
        %v434 = vld [vmem:[#allocation5 + $0x40] sm:$0xff]
        %v435 = vld [vmem:[#allocation5 + $0x48] sm:$0xff]
        %v436 = vld [vmem:[#allocation5 + $0x50] sm:$0xff]
        %v437 = vld [vmem:[#allocation5 + $0x58] sm:$0xff]
        %v438 = vld [vmem:[#allocation5 + $0x60] sm:$0xff]
        %v439 = vld [vmem:[#allocation5 + $0x68] sm:$0xff]
        %v440 = vld [vmem:[#allocation5 + $0x70] sm:$0xff]
        %v441 = vld [vmem:[#allocation5 + $0x78] sm:$0xff]
        %v442 = vld [vmem:[#allocation5 + $0x80] sm:$0xff]
        %v443 = vld [vmem:[#allocation5 + $0x88] sm:$0xff]
        %v444 = vld [vmem:[#allocation5 + $0x90] sm:$0xff]
        %v445 = vld [vmem:[#allocation5 + $0x98] sm:$0xff]
        %v446 = vld [vmem:[#allocation5 + $0xa0] sm:$0xff]
        %v447 = vld [vmem:[#allocation5 + $0xa8] sm:$0xff]
        %v448 = vld [vmem:[#allocation5 + $0xb0] sm:$0xff]
        %v449 = vld [vmem:[#allocation5 + $0xb8] sm:$0xff]
        %v450 = vld [vmem:[#allocation5 + $0xc0] sm:$0xff]
        %v451 = vld [vmem:[#allocation5 + $0xc8] sm:$0xff]
        %v452 = vld [vmem:[#allocation5 + $0xd0] sm:$0xff]
        %v453 = vld [vmem:[#allocation5 + $0xd8] sm:$0xff]
        %v454 = vld [vmem:[#allocation5 + $0xe0] sm:$0xff]
        %v455 = vld [vmem:[#allocation5 + $0xe8] sm:$0xff]
        %v456 = vld [vmem:[#allocation5 + $0xf0] sm:$0xff]
        %v457 = vld [vmem:[#allocation5 + $0xf8] sm:$0xff]
        %v458 = vld [vmem:[#allocation5 + $0x100] sm:$0xff]
        %v459 = vld [vmem:[#allocation5 + $0x108] sm:$0xff]
        %v460 = vld [vmem:[#allocation5 + $0x110] sm:$0xff]
        %v461 = vld [vmem:[#allocation5 + $0x118] sm:$0xff]
        %v462 = vld [vmem:[#allocation5 + $0x120] sm:$0xff]
        %v463 = vld [vmem:[#allocation5 + $0x128] sm:$0xff]
        %v464 = vld [vmem:[#allocation5 + $0x130] sm:$0xff]
        %v465 = vld [vmem:[#allocation5 + $0x138] sm:$0xff]
        %v466 = vld [vmem:[#allocation5 + $0x140] sm:$0xff]
        %v467 = vld [vmem:[#allocation5 + $0x148] sm:$0xff]
        %v468 = vld [vmem:[#allocation5 + $0x150] sm:$0xff]
        %v469 = vld [vmem:[#allocation5 + $0x158] sm:$0xff]
        %v470 = vld [vmem:[#allocation5 + $0x160] sm:$0xff]
        %v471 = vld [vmem:[#allocation5 + $0x168] sm:$0xff]
        %v472 = vld [vmem:[#allocation5 + $0x170] sm:$0xff]
        %v473 = vld [vmem:[#allocation5 + $0x178] sm:$0xff]
        %v474 = vld [vmem:[#allocation5 + $0x180] sm:$0xff]
        %v475 = vld [vmem:[#allocation5 + $0x188] sm:$0xff]
        %v476 = vld [vmem:[#allocation5 + $0x190] sm:$0xff]
        %v477 = vld [vmem:[#allocation5 + $0x198] sm:$0xff]
        %v478 = vld [vmem:[#allocation5 + $0x1a0] sm:$0xff]
        %v479 = vld [vmem:[#allocation5 + $0x1a8] sm:$0xff]
        %v480 = vld [vmem:[#allocation5 + $0x1b0] sm:$0xff]
        %v481 = vld [vmem:[#allocation5 + $0x1b8] sm:$0xff]
        %v482 = vld [vmem:[#allocation5 + $0x1c0] sm:$0xff]
        %v483 = vld [vmem:[#allocation5 + $0x1c8] sm:$0xff]
        %v484 = vld [vmem:[#allocation5 + $0x1d0] sm:$0xff]
        %v485 = vld [vmem:[#allocation5 + $0x1d8] sm:$0xff]
        %v486 = vld [vmem:[#allocation5 + $0x1e0] sm:$0xff]
        %v487 = vld [vmem:[#allocation5 + $0x1e8] sm:$0xff]
        %v488 = vld [vmem:[#allocation5 + $0x1f0] sm:$0xff]
        %v489 = vld [vmem:[#allocation5 + $0x1f8] sm:$0xff]
        %v490 = vld [vmem:[#allocation5 + $0x200] sm:$0xff]
        %v491 = vld [vmem:[#allocation5 + $0x208] sm:$0xff]
        %v492 = vld [vmem:[#allocation5 + $0x210] sm:$0xff]
        %v493 = vld [vmem:[#allocation5 + $0x218] sm:$0xff]
        %v494 = vld [vmem:[#allocation5 + $0x220] sm:$0xff]
        %v495 = vld [vmem:[#allocation5 + $0x228] sm:$0xff]
        %v496 = vld [vmem:[#allocation5 + $0x230] sm:$0xff]
        %v497 = vld [vmem:[#allocation5 + $0x238] sm:$0xff]
        %v498 = vld [vmem:[#allocation5 + $0x240] sm:$0xff]
        %v499 = vld [vmem:[#allocation5 + $0x248] sm:$0xff]
        %v500 = vld [vmem:[#allocation5 + $0x250] sm:$0xff]
        %v501 = vld [vmem:[#allocation5 + $0x258] sm:$0xff]
        %v502 = vld [vmem:[#allocation5 + $0x260] sm:$0xff]
        %v503 = vld [vmem:[#allocation5 + $0x268] sm:$0xff]
        %v504 = vld [vmem:[#allocation5 + $0x270] sm:$0xff]
        %v505 = vld [vmem:[#allocation5 + $0x278] sm:$0xff]
        %v506 = vld [vmem:[#allocation5 + $0x280] sm:$0xff]
        %v507 = vld [vmem:[#allocation5 + $0x288] sm:$0xff]
        %v508 = vld [vmem:[#allocation5 + $0x290] sm:$0xff]
        %v509 = vld [vmem:[#allocation5 + $0x298] sm:$0xff]
        %v510 = vld [vmem:[#allocation5 + $0x2a0] sm:$0xff]
        %v511 = vld [vmem:[#allocation5 + $0x2a8] sm:$0xff]
        %v512 = vld [vmem:[#allocation5 + $0x2b0] sm:$0xff]
        %v513 = vld [vmem:[#allocation5 + $0x2b8] sm:$0xff]
        %v514 = vld [vmem:[#allocation5 + $0x2c0] sm:$0xff]
        %v515 = vld [vmem:[#allocation5 + $0x2c8] sm:$0xff]
        %v516 = vld [vmem:[#allocation5 + $0x2d0] sm:$0xff]
        %v517 = vld [vmem:[#allocation5 + $0x2d8] sm:$0xff]
        %v518 = vld [vmem:[#allocation5 + $0x2e0] sm:$0xff]
        %v519 = vld [vmem:[#allocation5 + $0x2e8] sm:$0xff]
        %v520 = vld [vmem:[#allocation5 + $0x2f0] sm:$0xff]
        %v521 = vld [vmem:[#allocation5 + $0x2f8] sm:$0xff]
        %v522 = vld [vmem:[#allocation5 + $0x300] sm:$0xff]
        %v523 = vld [vmem:[#allocation5 + $0x308] sm:$0xff]
        %v524 = vld [vmem:[#allocation5 + $0x310] sm:$0xff]
        %v525 = vld [vmem:[#allocation5 + $0x318] sm:$0xff]
        %v526 = vld [vmem:[#allocation5 + $0x320] sm:$0xff]
        %v527 = vld [vmem:[#allocation5 + $0x328] sm:$0xff]
        %v528 = vld [vmem:[#allocation5 + $0x330] sm:$0xff]
        %v529 = vld [vmem:[#allocation5 + $0x338] sm:$0xff]
        %v530 = vld [vmem:[#allocation5 + $0x340] sm:$0xff]
        %v531 = vld [vmem:[#allocation5 + $0x348] sm:$0xff]
        %v532 = vld [vmem:[#allocation5 + $0x350] sm:$0xff]
        %v533 = vld [vmem:[#allocation5 + $0x358] sm:$0xff]
        %v534 = vld [vmem:[#allocation5 + $0x360] sm:$0xff]
        %v535 = vld [vmem:[#allocation5 + $0x368] sm:$0xff]
        %v536 = vld [vmem:[#allocation5 + $0x370] sm:$0xff]
        %v537 = vld [vmem:[#allocation5 + $0x378] sm:$0xff]
        %v538 = vld [vmem:[#allocation5 + $0x380] sm:$0xff]
        %v539 = vld [vmem:[#allocation5 + $0x388] sm:$0xff]
        %v540 = vld [vmem:[#allocation5 + $0x390] sm:$0xff]
        %v541 = vld [vmem:[#allocation5 + $0x398] sm:$0xff]
        %v542 = vld [vmem:[#allocation5 + $0x3a0] sm:$0xff]
        %v543 = vld [vmem:[#allocation5 + $0x3a8] sm:$0xff]
        %v544 = vld [vmem:[#allocation5 + $0x3b0] sm:$0xff]
        %v545 = vld [vmem:[#allocation5 + $0x3b8] sm:$0xff]
        %v546 = vld [vmem:[#allocation5 + $0x3c0] sm:$0xff]
        %v547 = vld [vmem:[#allocation5 + $0x3c8] sm:$0xff]
        %v548 = vld [vmem:[#allocation5 + $0x3d0] sm:$0xff]
        %v549 = vld [vmem:[#allocation5 + $0x3d8] sm:$0xff]
        %v550 = vld [vmem:[#allocation5 + $0x3e0] sm:$0xff]
        %v551 = vld [vmem:[#allocation5 + $0x3e8] sm:$0xff]
        %v552 = vld [vmem:[#allocation5 + $0x3f0] sm:$0xff]
        %v553 = vld [vmem:[#allocation5 + $0x3f8] sm:$0xff]
        %554 = vmatprep.subr.mxu0 %v457
        %555 = vmatpush1.msra.mxu0 %v456
        %556 = vmatprep.subr.mxu0 %v455
        %557 = vmatpush1.msra.mxu0 %v454
        %558 = vmatprep.subr.mxu0 %v453
        %559 = vmatpush1.msra.mxu0 %v452
        %560 = vmatprep.subr.mxu0 %v451
        %561 = vmatpush1.msra.mxu0 %v450
        %562 = vmatprep.subr.mxu0 %v449
        %563 = vmatpush1.msra.mxu0 %v448
        %564 = vmatprep.subr.mxu0 %v447
        %565 = vmatpush1.msra.mxu0 %v446
        %566 = vmatprep.subr.mxu0 %v445
        %567 = vmatpush1.msra.mxu0 %v444
        %568 = vmatprep.subr.mxu0 %v443
        %569 = vmatpush1.msra.mxu0 %v442
        %570 = vmatprep.subr.mxu0 %v441
        %571 = vmatpush1.msra.mxu0 %v440
        %572 = vmatprep.subr.mxu0 %v439
        %573 = vmatpush1.msra.mxu0 %v438
        %574 = vmatprep.subr.mxu0 %v437
        %575 = vmatpush1.msra.mxu0 %v436
        %576 = vmatprep.subr.mxu0 %v435
        %577 = vmatpush1.msra.mxu0 %v434
        %578 = vmatprep.subr.mxu0 %v433
        %579 = vmatpush1.msra.mxu0 %v432
        %580 = vmatprep.subr.mxu0 %v431
        %581 = vmatpush1.msra.mxu0 %v430
        %582 = vmatprep.subr.mxu0 %v429
        %583 = vmatpush1.msra.mxu0 %v428
        %584 = vmatprep.subr.mxu0 %v427
        %585 = vmatpush1.msra.mxu0 %v426
        %586 = vmatprep.subr.mxu0 %v489
        %587 = vmatpush2.msra.mxu0 %v488
        %588 = vmatprep.subr.mxu0 %v487
        %589 = vmatpush2.msra.mxu0 %v486
        %590 = vmatprep.subr.mxu0 %v485
        %591 = vmatpush2.msra.mxu0 %v484
        %592 = vmatprep.subr.mxu0 %v483
        %593 = vmatpush2.msra.mxu0 %v482
        %594 = vmatprep.subr.mxu0 %v481
        %595 = vmatpush2.msra.mxu0 %v480
        %596 = vmatprep.subr.mxu0 %v479
        %597 = vmatpush2.msra.mxu0 %v478
        %598 = vmatprep.subr.mxu0 %v477
        %599 = vmatpush2.msra.mxu0 %v476
        %600 = vmatprep.subr.mxu0 %v475
        %601 = vmatpush2.msra.mxu0 %v474
        %602 = vmatprep.subr.mxu0 %v473
        %603 = vmatpush2.msra.mxu0 %v472
        %604 = vmatprep.subr.mxu0 %v471
        %605 = vmatpush2.msra.mxu0 %v470
        %606 = vmatprep.subr.mxu0 %v469
        %607 = vmatpush2.msra.mxu0 %v468
        %608 = vmatprep.subr.mxu0 %v467
        %609 = vmatpush2.msra.mxu0 %v466
        %610 = vmatprep.subr.mxu0 %v465
        %611 = vmatpush2.msra.mxu0 %v464
        %612 = vmatprep.subr.mxu0 %v463
        %613 = vmatpush2.msra.mxu0 %v462
        %614 = vmatprep.subr.mxu0 %v461
        %615 = vmatpush2.msra.mxu0 %v460
        %616 = vmatprep.subr.mxu0 %v459
        %617 = vmatpush2.msra.mxu0 %v458
        %618 = vmatprep.mubr.f32.mxu0 %v407
        %619 = vmatmul.mubr.f32.gmra.mxu0 %v406
        %v620 = vpop.f32.mrf.mxu0
        %v621 = vadd.f32 0.0, %v620
        %v622 = vpop.f32.mrf.mxu0
        %v623 = vadd.f32 0.0, %v622
        %624 = vdwg.mxu0
        %625 = vmatprep.subr.mxu0 %v521
        %626 = vmatpush1.msra.mxu0 %v520
        %627 = vmatprep.subr.mxu0 %v519
        %628 = vmatpush1.msra.mxu0 %v518
        %629 = vmatprep.subr.mxu0 %v517
        %630 = vmatpush1.msra.mxu0 %v516
        %631 = vmatprep.subr.mxu0 %v515
        %632 = vmatpush1.msra.mxu0 %v514
        %633 = vmatprep.subr.mxu0 %v513
        %634 = vmatpush1.msra.mxu0 %v512
        %635 = vmatprep.subr.mxu0 %v511
        %636 = vmatpush1.msra.mxu0 %v510
        %637 = vmatprep.subr.mxu0 %v509
        %638 = vmatpush1.msra.mxu0 %v508
        %639 = vmatprep.subr.mxu0 %v507
        %640 = vmatpush1.msra.mxu0 %v506
        %641 = vmatprep.subr.mxu0 %v505
        %642 = vmatpush1.msra.mxu0 %v504
        %643 = vmatprep.subr.mxu0 %v503
        %644 = vmatpush1.msra.mxu0 %v502
        %645 = vmatprep.subr.mxu0 %v501
        %646 = vmatpush1.msra.mxu0 %v500
        %647 = vmatprep.subr.mxu0 %v499
        %648 = vmatpush1.msra.mxu0 %v498
        %649 = vmatprep.subr.mxu0 %v497
        %650 = vmatpush1.msra.mxu0 %v496
        %651 = vmatprep.subr.mxu0 %v495
        %652 = vmatpush1.msra.mxu0 %v494
        %653 = vmatprep.subr.mxu0 %v493
        %654 = vmatpush1.msra.mxu0 %v492
        %655 = vmatprep.subr.mxu0 %v491
        %656 = vmatpush1.msra.mxu0 %v490
        %657 = vmatprep.subr.mxu0 %v553
        %658 = vmatpush2.msra.mxu0 %v552
        %659 = vmatprep.subr.mxu0 %v551
        %660 = vmatpush2.msra.mxu0 %v550
        %661 = vmatprep.subr.mxu0 %v549
        %662 = vmatpush2.msra.mxu0 %v548
        %663 = vmatprep.subr.mxu0 %v547
        %664 = vmatpush2.msra.mxu0 %v546
        %665 = vmatprep.subr.mxu0 %v545
        %666 = vmatpush2.msra.mxu0 %v544
        %667 = vmatprep.subr.mxu0 %v543
        %668 = vmatpush2.msra.mxu0 %v542
        %669 = vmatprep.subr.mxu0 %v541
        %670 = vmatpush2.msra.mxu0 %v540
        %671 = vmatprep.subr.mxu0 %v539
        %672 = vmatpush2.msra.mxu0 %v538
        %673 = vmatprep.subr.mxu0 %v537
        %674 = vmatpush2.msra.mxu0 %v536
        %675 = vmatprep.subr.mxu0 %v535
        %676 = vmatpush2.msra.mxu0 %v534
        %677 = vmatprep.subr.mxu0 %v533
        %678 = vmatpush2.msra.mxu0 %v532
        %679 = vmatprep.subr.mxu0 %v531
        %680 = vmatpush2.msra.mxu0 %v530
        %681 = vmatprep.subr.mxu0 %v529
        %682 = vmatpush2.msra.mxu0 %v528
        %683 = vmatprep.subr.mxu0 %v527
        %684 = vmatpush2.msra.mxu0 %v526
        %685 = vmatprep.subr.mxu0 %v525
        %686 = vmatpush2.msra.mxu0 %v524
        %687 = vmatprep.subr.mxu0 %v523
        %688 = vmatpush2.msra.mxu0 %v522
        %689 = vmatprep.mubr.f32.mxu0 %v425
        %690 = vmatmul.mubr.f32.gmra.mxu0 %v416
        %v691 = vpop.f32.mrf.mxu0
        %v692 = vadd.f32 %v621, %v691
        %v693 = vpop.f32.mrf.mxu0
        %v694 = vadd.f32 %v623, %v693
        %695 = vdwg.mxu0
        %vm696 = vcmask 1040384
        %v697 = vsel %vm696, %v692, 0.0
        %v698 = vsel %vm696, %v694, 0.0
        %v699 = vadd.f32 %v697, %v698
        %700 = vadd.xlane.f32.xlu0 %v699
        %v701 = vpop.xlane.xlu0 %700
        %v702 = vmul.f32 %v701, %v224
        %v703 = vsub.f32 %v692, %v702
        %v704 = vsub.f32 %v694, %v702
        %v705 = vmul.f32 %v703, %v703
        %v706 = vmul.f32 %v704, %v704
        %v707 = vsel %vm696, %v705, 0.0
        %v708 = vsel %vm696, %v706, 0.0
        %v709 = vadd.f32 %v707, %v708
        %710 = vadd.xlane.f32.xlu0 %v709
        %v711 = vpop.xlane.xlu0 %710
        %v712 = vmul.f32 %v711, %v224
        %v713 = vadd.f32 %v712, 1e-05
        %v714 = vrsqrt.pop %v713
        %v715 = vrcp.pop %v713
        %v716 = vmul.f32 %v712, %v715
        %v717 = vadd.f32 %v716, 1e-05
        %v718 = vrsqrt.pop %v717
        %v719 = vmul.f32 %v714, %v718
        %v720 = vmul.f32 %v703, %v719
        %v721 = vmul.f32 %v704, %v719
        %v722 = vxor.u32 %v720, 2147483648
        %v723 = vxor.u32 %v721, 2147483648
        %v724 = vmul.f32 %v722, 1.442695
        %v725 = vpow.pop %v724
        %v726 = vmul.f32 %v723, 1.442695
        %v727 = vpow.pop %v726
        %v728 = vadd.f32 %v725, 1.0
        %v729 = vadd.f32 %v727, 1.0
        %v730 = vrcp.pop %v728
        %v731 = vmul.f32 1.0, %v730
        %v732 = vrcp.pop %v729
        %v733 = vmul.f32 1.0, %v732
        %v734 = vlaneseq
        %v735 = vshrl.u32 %v734, 7
        %v736 = vsub.s32 0, %v735
        %v737 = vrot.slane %v731, %v736
        %v738 = vlaneseq
        %v739 = vshrl.u32 %v738, 7
        %v740 = vsub.s32 0, %v739
        %v741 = vrot.slane %v733, %v740
        %v742 = vmul.f32 %v379, %v737
        %v743 = vmul.f32 %v380, %v741
        %v744 = vmul.f32 %v381, %v737
        %v745 = vmul.f32 %v382, %v741
        %v746 = vmul.f32 %v383, %v737
        %v747 = vmul.f32 %v384, %v741
        %v748 = vmul.f32 %v385, %v737
        %v749 = vmul.f32 %v386, %v741
        %750 = vst [vmem:[%s203] sm:$0xff] %v742
        %751 = vst [vmem:[%s203 + $0x8] sm:$0xff] %v743
        %752 = vst [vmem:[%s203 + $0x10] sm:$0xff] %v744
        %753 = vst [vmem:[%s203 + $0x18] sm:$0xff] %v745
        %754 = vst [vmem:[%s203 + $0x20] sm:$0xff] %v746
        %755 = vst [vmem:[%s203 + $0x28] sm:$0xff] %v747
        %756 = vst [vmem:[%s203 + $0x30] sm:$0xff] %v748
        %757 = vst [vmem:[%s203 + $0x38] sm:$0xff] %v749
        %s758 = sand.u32 %s97, 1
        %s759 = scalar_lea.sflag [#allocation4], %s758
        %s760 = sand.u32 %s97, 1
        %s761 = smul.addr %s760, 64
        %s762 = scalar_lea.vmem [#allocation7], %s761
        // Predicated region
        $region41: #{tpu_custom_call.1} parent=31 // pred_check
          %p763 = pneg %p107
        $region42: #{tpu_custom_call.1} parent=31 // pred_check_branch
          %765 = sbr.rel (%p763) target = $region44
        $region43: #{tpu_custom_call.1} parent=31 // pred_region
          %s767 = ssub.s32 1024, 1024
          %768 = vsyncadd %s759, %s767
          %s769 = smul.addr %s21, 8
          %s770 = smul.addr %s769, 128
          %s771 = scalar_lea.hbm %s3, %s770
          %s772 = sshll.u32 %s762, 4
          %s773 = int_to_ptr.vmem [resolvable:$true] %s772
          %778 = dma.vmem_to_hbm [thread:$0]  %s773, 1024, %s771, %s759, 256, 256, 16
        $region44: #{tpu_custom_call.1} parent=31 // pred_fallthru
          _
      $region32: #{tpu_custom_call.1} parent=5 // pred_fallthru
        _
      %p779 = scmp.le.s32.totalorder 2, %s16
      // Predicated region
      $region45: #{tpu_custom_call.1} parent=5 // pred_check
        %p780 = pneg %p779
      $region46: #{tpu_custom_call.1} parent=5 // pred_check_branch
        %782 = sbr.rel (%p780) target = $region48
      $region47: #{tpu_custom_call.1} parent=5 // pred_region
        %s783 = ssub.s32 %s16, 2
        // Predicated region
        $region49: #{tpu_custom_call.1} parent=47 // pred_check
          %p784 = pneg %p113
        $region50: #{tpu_custom_call.1} parent=47 // pred_check_branch
          %786 = sbr.rel (%p784) target = $region52
        $region51: #{tpu_custom_call.1} parent=47 // pred_region
          %s787 = sand.u32 %s98, 1
          %s788 = scalar_lea.sflag [#allocation4], %s787
          %s789 = sand.u32 %s98, 1
          %s790 = smul.addr %s789, 64
          %s791 = scalar_lea.vmem [#allocation7], %s790
          %792 = dma.done %s788, 1024
        $region52: #{tpu_custom_call.1} parent=47 // pred_fallthru
          _
      $region48: #{tpu_custom_call.1} parent=5 // pred_fallthru
        _
    $region6: #{tpu_custom_call.1} parent=1 // loop_footer
      %s20 = sadd.s32 1, %s16
    $region7: #{tpu_custom_call.1} parent=1 // loop_footer_branch
      %15 = sbr.rel target = $region3
    $region8: #{tpu_custom_call.1} parent=1 // loop_exit
      _
    %793 = vsyncpa [#allocation3], 1
    %s794 = scalar_lea.sflag [#allocation3], 1
    %795 = vsyncpa %s794, 1
    %796 = vsyncpa [#allocation6], 1
    %797 = vsyncpa [#allocation4], 1
    %s798 = scalar_lea.sflag [#allocation4], 1
    %799 = vsyncpa %s798, 1

</llo_original>
